<compile_context>
chip_gen: v7x
topology: tpu7x:2x2x1
jax: 0.10.0
libtpu: 0.0.40
codegen_flags: <defaults>
</compile_context>

<pallas_src>
import functools

import jax
import jax.numpy as jnp
from jax.experimental import pallas as pl
from jax.experimental.pallas import tpu as pltpu

CHANNELS = ((3, 8, 16), (16, 32, 32), (32, 64, 64), (64, 128, 128), (128, 128, 128))
DOWNSAMPLED = (3, 4)
_TAPS = tuple((oy, ox) for oy in (-1, 0, 1) for ox in (-1, 0, 1))


# ----------------------------- Pallas kernel ---------------------------------

def _conv3x3_flat(a, w_ref, b_ref, Wc, masks, apply_relu, roll_like_jnp):
    """'same' 3x3 conv on a flattened (M=B*Hc*Wc, Cin) batched feature map.

    a      : (M, Cin) f32 value
    w_ref  : (9*Cin, Cout) bf16 ref -> K-packed single-dot path, or
             (9, Cin, Cout) bf16 ref -> 9-tap f32-accumulate path
    b_ref  : (1, Cout) f32 ref
    masks  : list of 9 (M, 1) bool values (per-image boundary masks, hoisted)
    """
    M = a.shape[0]
    taps = []
    for t, (oy, ox) in enumerate(_TAPS):
        k = oy * Wc + ox                               # flattened source offset
        if k == 0:
            shifted = a
        else:
            shift = (-k) % M if roll_like_jnp else k % M
            shifted = pltpu.roll(a, shift=shift, axis=0)
        # Masks zero every tap whose source crosses an image / spatial boundary,
        # so the roll's wraparound (incl. across images in the batched slab) is safe.
        taps.append(jnp.where(masks[t], shifted, 0.0).astype(jnp.bfloat16))

    if len(w_ref.shape) == 2:                          # K-packed: one dot, K = 9*Cin
        packed = jnp.concatenate(taps, axis=1)         # (M, 9*Cin) bf16
        acc = jnp.dot(packed, w_ref[...], preferred_element_type=jnp.float32)
    else:                                              # 9 small dots, f32 accumulate
        acc = jnp.dot(taps[0], w_ref[0], preferred_element_type=jnp.float32)
        for t in range(1, 9):
            acc = acc + jnp.dot(taps[t], w_ref[t],
                                preferred_element_type=jnp.float32)

    acc = acc + b_ref[...]                             # bias / ReLU in f32
    if apply_relu:
        acc = jnp.maximum(acc, 0.0)
    return acc


def _disc_kernel(*refs, channels, downsampled, H, W, B, roll_like_jnp):
    """Fused discriminator forward for B images (one grid step)."""
    n_pool = len(downsampled)
    idx = 0
    x_ref = refs[idx]; idx += 1
    pool_refs = refs[idx:idx + n_pool]; idx += n_pool
    blk_refs = []
    for _ in channels:
        blk_refs.append(refs[idx:idx + 6]); idx += 6
    wfc1, bfc1, wfc2, bfc2 = refs[idx:idx + 4]; idx += 4
    o_ref = refs[idx]

    a = x_ref[0].astype(jnp.float32)                   # (B*H*W, 3)

    # Boundary masks, computed once per spatial size and reused (hoisted).
    mask_cache = {}

    def masks_for(Hc, Wc):
        if (Hc, Wc) not in mask_cache:
            S = Hc * Wc
            pos = jax.lax.broadcasted_iota(jnp.int32, (B * S, 1), 0)
            local = pos % S                            # position within its own image
            row = local // Wc
            col = local - row * Wc
            ms = []
            for oy, ox in _TAPS:
                ms.append((row + oy >= 0) & (row + oy < Hc) &
                          (col + ox >= 0) & (col + ox < Wc))
            mask_cache[(Hc, Wc)] = ms
        return mask_cache[(Hc, Wc)]

    Hc, Wc = H, W
    pool_i = 0
    for bi, _ in enumerate(channels):
        w1, b1, w2, b2, wsc, bsc = blk_refs[bi]
        ms = masks_for(Hc, Wc)
        h = _conv3x3_flat(a, w1, b1, Wc, ms, True, roll_like_jnp)
        h = _conv3x3_flat(h, w2, b2, Wc, ms, False, roll_like_jnp)
        sc = jnp.dot(a.astype(jnp.bfloat16), wsc[...],
                     preferred_element_type=jnp.float32) + bsc[...]
        a = h + sc
        if bi in downsampled:                          # 2x2 avg pool, one image at a time
            S = Hc * Wc
            P = pool_refs[pool_i][...]                 # (S//4, S) bf16
            a_bf = a.astype(jnp.bfloat16)
            parts = [jnp.dot(P, a_bf[b * S:(b + 1) * S, :],
                             preferred_element_type=jnp.float32)
                     for b in range(B)]
            a = parts[0] if B == 1 else jnp.concatenate(parts, axis=0)
            pool_i += 1
            Hc, Wc = Hc // 2, Wc // 2

    # Head: ReLU -> global average pool (XLU mean) -> Linear -> ReLU -> Linear -> sigmoid
    S_last = Hc * Wc
    f = jnp.maximum(a, 0.0)                            # (B*S_last, C_last) f32
    pooled_parts = [jnp.mean(f[b * S_last:(b + 1) * S_last, :], axis=0, keepdims=True)
                    for b in range(B)]
    pooled = pooled_parts[0] if B == 1 else jnp.concatenate(pooled_parts, axis=0)
    hfc = jnp.dot(pooled.astype(jnp.bfloat16), wfc1[...],
                  preferred_element_type=jnp.float32) + bfc1[...]
    hfc = jnp.maximum(hfc, 0.0)
    logit = jnp.dot(hfc.astype(jnp.bfloat16), wfc2[...],
                    preferred_element_type=jnp.float32) + bfc2[...]
    o_ref[0] = (1.0 / (1.0 + jnp.exp(-logit))).astype(o_ref.dtype)


# ------------------------------ Wrapper (glue) --------------------------------

def _const_spec(arr):
    zeros = (0,) * arr.ndim
    return pl.BlockSpec(arr.shape, lambda n, _z=zeros: _z)


def _make_pool_matrix(Hc, Wc):
    """(Hc*Wc/4, Hc*Wc) bf16 matrix implementing a 2x2 average pool on the flat map."""
    Ho, Wo = Hc // 2, Wc // 2
    q = jnp.arange(Ho * Wo)[:, None]
    p = jnp.arange(Hc * Wc)[None, :]
    sel = ((p // Wc) // 2 == q // Wo) & ((p % Wc) // 2 == q % Wo)
    return jnp.where(sel, 0.25, 0.0).astype(jnp.bfloat16)   # 0.25 exact in bf16


def _mxu_is_256_deep():
    """True on chips with a 256-deep MXU (v6e / v7x), where K-packing pays off."""
    try:
        kind = jax.devices()[0].device_kind.lower()
    except Exception:
        return True
    return not any(v in kind for v in ("v2", "v3", "v4", "v5"))


def _format_conv_w(w, pack):
    kh, kw, cin, cout = w.shape
    w9 = w.reshape(kh * kw, cin, cout).astype(jnp.bfloat16)
    return w9.reshape(kh * kw * cin, cout) if pack else w9


def _flops_per_image(H, W):
    flops, (Hc, Wc) = 0, (H, W)
    for i, (cin, ch, cout) in enumerate(CHANNELS):
        S = Hc * Wc
        flops += 2 * S * (9 * cin * ch + 9 * ch * cout + cin * cout)
        if i in DOWNSAMPLED:
            flops += 2 * (S // 4) * S * cout
            Hc, Wc = Hc // 2, Wc // 2
    flops += 2 * CHANNELS[-1][2] * 64 + 2 * 64
    return flops


def discriminator_forward(params, img_nchw, *, images_per_step=None, roll_like_jnp=True):
    """img_nchw: (N, 3, H, W) like the PyTorch module.  Returns (N, 1) probabilities."""
    N, C0, H, W = img_nchw.shape
    S0 = H * W

    # B images per grid step: amortizes the ~0.35us per-step overhead and fills the
    # matmul M dim, while keeping >= 2 grid steps so both v7x TensorCores get work.
    B = images_per_step if images_per_step is not None else max(1, min(8, -(-N // 2)))
    G = -(-N // B)
    Npad = G * B

    x = jnp.transpose(img_nchw, (0, 2, 3, 1)).reshape(N, S0, C0).astype(jnp.float32)
    if Npad != N:
        x = jnp.concatenate([x, jnp.zeros((Npad - N, S0, C0), jnp.float32)], axis=0)
    x = x.reshape(G, B * S0, C0)                        # one flat slab per grid step

    flat_inputs = [x]
    in_specs = [pl.BlockSpec((1, B * S0, C0), lambda n: (n, 0, 0))]

    # Pool matrices (one per downsampling block, in block order), bf16.
    Hc, Wc = H, W
    for i in range(len(CHANNELS)):
        if i in DOWNSAMPLED:
            P = _make_pool_matrix(Hc, Wc)
            flat_inputs.append(P); in_specs.append(_const_spec(P))
            Hc, Wc = Hc // 2, Wc // 2

    # Block weights: HWIO -> (9*Cin, Cout) bf16 (K-packed) for the big convs on
    # v6e/v7x, (9, Cin, Cout) bf16 otherwise; biases (1, C) f32.
    pack_ok = _mxu_is_256_deep()
    for blk in params["blocks"]:
        w1 = _format_conv_w(blk["w1"], pack_ok and blk["w1"].shape[2] >= 64)
        w2 = _format_conv_w(blk["w2"], pack_ok and blk["w2"].shape[2] >= 64)
        wsc = blk["wsc"].reshape(blk["wsc"].shape[2],
                                 blk["wsc"].shape[3]).astype(jnp.bfloat16)
        for arr in (w1, blk["b1"].reshape(1, -1), w2, blk["b2"].reshape(1, -1),
                    wsc, blk["bsc"].reshape(1, -1)):
            flat_inputs.append(arr); in_specs.append(_const_spec(arr))

    # Head weights.
    for arr in (params["w_fc1"].astype(jnp.bfloat16), params["b_fc1"].reshape(1, -1),
                params["w_fc2"].astype(jnp.bfloat16), params["b_fc2"].reshape(1, -1)):
        flat_inputs.append(arr); in_specs.append(_const_spec(arr))

    kern = functools.partial(_disc_kernel, channels=CHANNELS, downsampled=DOWNSAMPLED,
                             H=H, W=W, B=B, roll_like_jnp=roll_like_jnp)

    weight_bytes = sum(int(a.size) * a.dtype.itemsize for a in flat_inputs[1:])
    cost = pl.CostEstimate(flops=int(Npad * _flops_per_image(H, W)),
                           transcendentals=int(Npad),
                           bytes_accessed=int(x.size) * 4 + weight_bytes + Npad * 4)

    out = pl.pallas_call(
        kern,
        out_shape=jax.ShapeDtypeStruct((G, B, 1), jnp.float32),
        grid_spec=pltpu.PrefetchScalarGridSpec(
            num_scalar_prefetch=0,
            grid=(G,),
            in_specs=in_specs,
            out_specs=pl.BlockSpec((1, B, 1), lambda n: (n, 0, 0)),
        ),
        compiler_params=pltpu.CompilerParams(
            dimension_semantics=("parallel",)),
        cost_estimate=cost,
    )(*flat_inputs)
    return out.reshape(Npad, 1)[:N]


# ------------------------- roll-direction probe -------------------------------

def _roll_like_jnp():
    """Probe pltpu.roll's direction once (must run OUTSIDE jit)."""
    def k(x_ref, o_ref):
        o_ref[...] = pltpu.roll(x_ref[...], shift=1, axis=0)
    x = jnp.arange(8 * 128, dtype=jnp.float32).reshape(8, 128)
    y = pl.pallas_call(k, out_shape=jax.ShapeDtypeStruct((8, 128), jnp.float32))(x)
    return bool(jnp.allclose(y, jnp.roll(x, 1, axis=0)))


# ---------------------------- pure-JAX reference -------------------------------

def _ref_forward(params, img_nchw):
    """Reference forward (f32 activations, weights rounded to bf16 like the kernel)."""
    def q(w):
        return w.astype(jnp.bfloat16).astype(jnp.float32)

    x = jnp.transpose(img_nchw, (0, 2, 3, 1)).astype(jnp.float32)   # NHWC
    dn = ("NHWC", "HWIO", "NHWC")
    for i, blk in enumerate(params["blocks"]):
        h = jax.lax.conv_general_dilated(x, q(blk["w1"]), (1, 1), "SAME",
                                         dimension_numbers=dn) + blk["b1"]
        h = jnp.maximum(h, 0.0)
        h = jax.lax.conv_general_dilated(h, q(blk["w2"]), (1, 1), "SAME",
                                         dimension_numbers=dn) + blk["b2"]
        sc = jax.lax.conv_general_dilated(x, q(blk["wsc"]), (1, 1), "SAME",
                                          dimension_numbers=dn) + blk["bsc"]
        x = h + sc
        if i in DOWNSAMPLED:
            n, hh, ww, c = x.shape
            x = x.reshape(n, hh // 2, 2, ww // 2, 2, c).mean(axis=(2, 4))
    f = jnp.maximum(x, 0.0)
    pooled = f.mean(axis=(1, 2))
    h = jnp.maximum(pooled @ q(params["w_fc1"]) + params["b_fc1"], 0.0)
    logit = h @ q(params["w_fc2"]) + params["b_fc2"]
    return jax.nn.sigmoid(logit)


# --------------------------------- params --------------------------------------

def init_params(key):
    n_keys = 6 * len(CHANNELS) + 4
    keys = jax.random.split(key, n_keys)
    ki = iter(range(n_keys))

    def conv_init(k, kh, kw, cin, cout):
        return jax.random.normal(k, (kh, kw, cin, cout), jnp.float32) / jnp.sqrt(kh * kw * cin)

    def bias_init(k, c):
        return jax.random.normal(k, (c,), jnp.float32) * 0.1

    params = {"blocks": []}
    for (cin, ch, cout) in CHANNELS:
        params["blocks"].append({
            "w1": conv_init(keys[next(ki)], 3, 3, cin, ch),
            "b1": bias_init(keys[next(ki)], ch),
            "w2": conv_init(keys[next(ki)], 3, 3, ch, cout),
            "b2": bias_init(keys[next(ki)], cout),
            "wsc": conv_init(keys[next(ki)], 1, 1, cin, cout),
            "bsc": bias_init(keys[next(ki)], cout),
        })
    c_last = CHANNELS[-1][2]
    params["w_fc1"] = jax.random.normal(keys[next(ki)], (c_last, 64), jnp.float32) / jnp.sqrt(c_last)
    params["b_fc1"] = bias_init(keys[next(ki)], 64)
    params["w_fc2"] = jax.random.normal(keys[next(ki)], (64, 1), jnp.float32) / jnp.sqrt(64.0)
    params["b_fc2"] = bias_init(keys[next(ki)], 1)
    return params


# --------------------------------- main ----------------------------------------

if __name__ == "__main__":
    key = jax.random.PRNGKey(0)
    k_param, k_img = jax.random.split(key)
    params = init_params(k_param)

    roll_ok = _roll_like_jnp()                 # resolve roll direction outside jit

    # Main case: N=8 -> 4 images per grid step, 2 grid steps (both v7x cores busy).
    img = jax.random.normal(k_img, (8, 3, 16, 16), jnp.float32)   # NCHW like PyTorch
    fwd = jax.jit(functools.partial(discriminator_forward, roll_like_jnp=roll_ok))
    out = jax.block_until_ready(fwd(params, img))

    assert out.shape == (8, 1), out.shape
    assert bool(jnp.all(jnp.isfinite(out)))
    assert bool(jnp.all((out > 0.0) & (out < 1.0)))
    ref = _ref_forward(params, img)
    err = float(jnp.max(jnp.abs(out - ref)))
    assert err < 5e-2, f"kernel vs reference mismatch: {err}"

    # Second case exercises the batch-padding path (N not a multiple of B).
    img2 = jax.random.normal(jax.random.PRNGKey(1), (5, 3, 16, 16), jnp.float32)
    out2 = jax.block_until_ready(
        discriminator_forward(params, img2, roll_like_jnp=roll_ok))
    assert out2.shape == (5, 1), out2.shape
    err2 = float(jnp.max(jnp.abs(out2 - _ref_forward(params, img2))))
    assert err2 < 5e-2, f"padded-batch mismatch: {err2}"

    print("KERNEL_OK")
</pallas_src>

<mosaic_0001>
module attributes {stable_mosaic.version = 11 : i64} {
  func.func @k(%arg0: memref<8x128xf32, #tpu.memory_space<vmem>>, %arg1: memref<8x128xf32, #tpu.memory_space<vmem>>) attributes {dimension_semantics = [], scalar_prefetch = 0 : i64, scratch_operands = 0 : i64, tpu.core_type = #tpu.core_type<tc>} {
    %c0 = arith.constant 0 : index
    %c0_0 = arith.constant 0 : index
    %0 = vector.load %arg0[%c0, %c0_0] : memref<8x128xf32, #tpu.memory_space<vmem>>, vector<8x128xf32>
    %c1_i32 = arith.constant 1 : i32
    %1 = tpu.dynamic_rotate %0 by %c1_i32 dim 0 : vector<8x128xf32>, i32 -> vector<8x128xf32>
    %c0_1 = arith.constant 0 : index
    %c0_2 = arith.constant 0 : index
    %2 = vector.load %arg1[%c0_1, %c0_2] : memref<8x128xf32, #tpu.memory_space<vmem>>, vector<8x128xf32>
    tpu.vector_store %arg1[%c0_1, %c0_2], %1 {strides = array<i32>} : memref<8x128xf32, #tpu.memory_space<vmem>>, vector<8x128xf32>,
    return
  }
}

</mosaic_0001>

<llo_original>
// kernel: tpu_custom_call.1
$region0: #{tpu_custom_call.1}
  #allocation0 [shape = 'u32[]', space=smem, size = 0x4, offset = 0x4, fixed_abs, tag = 'smem constant byte address 0x4 - core index']
  #allocation1 [shape = 'u32[144,128]{1,0:T(1,128)}', space=vmem, size = 0x12000, scoped, tag = 'internal scratch']
  %s0 = inlined_call_operand.hbm [shape: f32[8,128], index: 0, kind: input, shape index: {}]
  %s1 = inlined_call_operand.hbm [shape: f32[8,128], index: 1, kind: output, shape index: {}]
  %s2 = sld [smem:[#allocation0]]
  $region18: #{tpu_custom_call.1} parent=0
    _
  %s4 = ssub.s32 1, %s2
  %s5 = scalar_select 0, %s4, %s2
  $region1: #{tpu_custom_call.1} parent=0
    #allocation2 [shape = 'u8[4096]{0}', space=vmem, size = 0x1000, scoped, tag = 'input window, operand 0, single buffered']
    #allocation3 [shape = 's32[1]{0}', space=sflag, size = 0x4, scoped, tag = 'scoped memory for tpu_custom_call.1']
    #allocation4 [shape = 's32[1]{0}', space=sflag, size = 0x4, scoped, tag = 'scoped memory for tpu_custom_call.1']
    #allocation5 [shape = 'u8[4096]{0}', space=vmem, size = 0x1000, scoped, tag = 'output window, operand 0, single buffered']
    %6 = vsyncpa [#allocation3], 0
    %7 = vsyncpa [#allocation4], 0
    // Predicated region
    $region2: #{tpu_custom_call.1} parent=1 // pred_check
      _
    $region3: #{tpu_custom_call.1} parent=1 // pred_check_branch
      %9 = sbr.rel (0) target = $region5
    $region4: #{tpu_custom_call.1} parent=1 // pred_region
      %s11 = ssub.s32 128, 128
      %12 = vsyncadd [#allocation3], %s11
      %s14 = sshll.u32 [#allocation2], 4
      %s15 = int_to_ptr.vmem [resolvable:$true] %s14
      %17 = dma.hbm_to_vmem [thread:$0]  %s0, 128, %s15, [#allocation3]
    $region5: #{tpu_custom_call.1} parent=1 // pred_fallthru
      _
    // Predicated region
    $region6: #{tpu_custom_call.1} parent=1 // pred_check
      _
    $region7: #{tpu_custom_call.1} parent=1 // pred_check_branch
      %19 = sbr.rel (0) target = $region9
    $region8: #{tpu_custom_call.1} parent=1 // pred_region
      %20 = dma.done [#allocation3], 128
    $region9: #{tpu_custom_call.1} parent=1 // pred_fallthru
      _
    %v21 = vld [vmem:[#allocation2] sm:$0xff]
    %v22 = vrot.slane %v21, 7
    %23 = vst [vmem:[#allocation5] sm:$0xff] %v22
    // Predicated region
    $region10: #{tpu_custom_call.1} parent=1 // pred_check
      _
    $region11: #{tpu_custom_call.1} parent=1 // pred_check_branch
      %25 = sbr.rel (0) target = $region13
    $region12: #{tpu_custom_call.1} parent=1 // pred_region
      %s27 = ssub.s32 128, 128
      %28 = vsyncadd [#allocation4], %s27
      %s30 = sshll.u32 [#allocation5], 4
      %s31 = int_to_ptr.vmem [resolvable:$true] %s30
      %33 = dma.vmem_to_hbm [thread:$0]  %s31, 128, %s1, [#allocation4]
    $region13: #{tpu_custom_call.1} parent=1 // pred_fallthru
      _
    // Predicated region
    $region14: #{tpu_custom_call.1} parent=1 // pred_check
      _
    $region15: #{tpu_custom_call.1} parent=1 // pred_check_branch
      %35 = sbr.rel (0) target = $region17
    $region16: #{tpu_custom_call.1} parent=1 // pred_region
      %36 = dma.done [#allocation4], 128
    $region17: #{tpu_custom_call.1} parent=1 // pred_fallthru
      _
    %37 = vsyncpa [#allocation3], 1
    %38 = vsyncpa [#allocation4], 1

</llo_original>
